<compile_context>
chip_gen: v7x
topology: tpu7x:2x2x1
jax: 0.10.0
libtpu: 0.0.40
codegen_flags: <defaults>
</compile_context>

<pallas_src>
import jax
import jax.numpy as jnp
from jax import lax
from jax.experimental import pallas as pl
from jax.experimental.pallas import tpu as pltpu


def cbf_kernel(x_ref, w1_ref, b1_ref, w2_ref, b2_ref, w3_ref, b3_ref, o_ref):
    x = x_ref[...]
    # Layer 1: Linear(input -> H) + ReLU  (f32 accumulation on the MXU).
    h1 = jnp.dot(x, w1_ref[...], preferred_element_type=jnp.float32)
    h1 = jnp.maximum(h1 + b1_ref[...], 0.0).astype(w2_ref.dtype)
    # Layer 2: Linear(H -> H) + ReLU.
    h2 = jnp.dot(h1, w2_ref[...], preferred_element_type=jnp.float32)
    h2 = jnp.maximum(h2 + b2_ref[...], 0.0).astype(w3_ref.dtype)
    # Layer 3: Linear(H -> 1), computed lane-dense: contract the hidden dim of
    # BOTH operands so the result is (8, tile_b) with batch on lanes; row 0
    # holds the real output (rows 1..7 of w3 are zero padding).
    out = lax.dot_general(
        w3_ref[...], h2,
        dimension_numbers=(((1,), (1,)), ((), ())),
        preferred_element_type=jnp.float32,
    )
    out = out[0:1, :] + b3_ref[...]                     # (1, tile_b), lane-dense
    o_ref[...] = out.reshape(o_ref.shape).astype(o_ref.dtype)


def _pad_to(a, shape):
    return jnp.pad(a, [(0, s - d) for d, s in zip(a.shape, shape)])


def _round_up(n, m):
    return ((n + m - 1) // m) * m


def cbf_forward(x, params, *, tile_b=1024, compute_dtype=jnp.float32):
    """x: [B, input_size] f32.  params: transposed weights ([in, out]) + biases."""
    B, F = x.shape
    w1, b1, w2, b2, w3, b3 = (params["w1"], params["b1"], params["w2"],
                              params["b2"], params["w3"], params["b3"])
    H = w1.shape[1]
    Hp = _round_up(H, 128)                 # pad hidden to full 128-lane vregs

    # Cap the row tile so the double-buffered x stream + resident h1/h2 stay
    # well inside the default scoped-VMEM budget even for wide observations.
    bytes_per_row = (F + 2 * Hp) * jnp.dtype(compute_dtype).itemsize
    vmem_rows = max(128, (8 << 20) // max(bytes_per_row, 1))
    tile_b = min(tile_b, _round_up(vmem_rows, 128))

    # Row tile: multiple of 128 (lane-dense output); single tile for small B.
    if B <= tile_b:
        tb = _round_up(max(B, 1), 128)
    else:
        tb = tile_b
    n_tiles = pl.cdiv(B, tb)
    Bp = n_tiles * tb

    xp = _pad_to(x, (Bp, F)).astype(compute_dtype)
    w1p = _pad_to(w1, (F, Hp)).astype(compute_dtype)
    b1p = _pad_to(b1, (1, Hp)).astype(jnp.float32)
    w2p = _pad_to(w2, (Hp, Hp)).astype(compute_dtype)
    b2p = _pad_to(b2, (1, Hp)).astype(jnp.float32)
    # w3: [H, 1] -> row layout [8, Hp] (row 0 real, rows 1..7 zero) so the final
    # matmul lhs is (8, 128)-aligned.
    w3p = _pad_to(w3.reshape(1, H), (8, Hp)).astype(compute_dtype)
    b3p = b3.reshape(1, 1).astype(jnp.float32)

    flops = 2 * Bp * (F * Hp + Hp * Hp + Hp)
    bytes_accessed = (xp.size * xp.dtype.itemsize
                      + (w1p.size + w2p.size + w3p.size) * w1p.dtype.itemsize
                      + (b1p.size + b2p.size + b3p.size) * 4
                      + Bp * 4)

    full = lambda a: pl.BlockSpec(a.shape, lambda i: (0,) * a.ndim)
    out = pl.pallas_call(
        cbf_kernel,
        grid=(n_tiles,),
        in_specs=[
            pl.BlockSpec((tb, F), lambda i: (i, 0)),     # stream x row-tiles
            full(w1p), full(b1p), full(w2p), full(b2p), full(w3p), full(b3p),
        ],
        out_specs=pl.BlockSpec((1, 1, tb), lambda i: (i, 0, 0)),
        out_shape=jax.ShapeDtypeStruct((n_tiles, 1, tb), jnp.float32),
        compiler_params=pltpu.CompilerParams(
            dimension_semantics=("parallel",)),
        cost_estimate=pl.CostEstimate(flops=flops, transcendentals=0,
                                      bytes_accessed=bytes_accessed),
    )(xp, w1p, b1p, w2p, b2p, w3p, b3p)

    # (n_tiles, 1, tb) lane-dense slab -> (B, 1) column (cheap: only B floats).
    return out.reshape(-1)[:B].reshape(B, 1)


def init_params(key, input_size, hidden_size=64):
    """Deterministic init mimicking nn.Linear (Kaiming-uniform-ish bounds).
    Weights are stored transposed: [in, out]."""
    k1, k2, k3, k4, k5, k6 = jax.random.split(key, 6)

    def lin(kw, kb, fan_in, fan_out):
        bound = 1.0 / jnp.sqrt(jnp.float32(fan_in))
        w = jax.random.uniform(kw, (fan_in, fan_out), jnp.float32, -bound, bound)
        b = jax.random.uniform(kb, (1, fan_out), jnp.float32, -bound, bound)
        return w, b

    w1, b1 = lin(k1, k2, input_size, hidden_size)
    w2, b2 = lin(k3, k4, hidden_size, hidden_size)
    w3, b3 = lin(k5, k6, hidden_size, 1)
    return {"w1": w1, "b1": b1, "w2": w2, "b2": b2, "w3": w3, "b3": b3}


def reference_forward(x, params):
    h1 = jnp.maximum(x @ params["w1"] + params["b1"], 0.0)
    h2 = jnp.maximum(h1 @ params["w2"] + params["b2"], 0.0)
    return h2 @ params["w3"] + params["b3"]


if __name__ == "__main__":
    key = jax.random.PRNGKey(0)
    kx, kp, kx2 = jax.random.split(key, 3)

    batch, input_size, hidden_size = 8, 32, 64
    x = jax.random.normal(kx, (batch, input_size), jnp.float32)
    params = init_params(kp, input_size, hidden_size)

    # Single-tile path.
    out = jax.block_until_ready(cbf_forward(x, params))
    ref = reference_forward(x, params)
    assert out.shape == (batch, 1)
    assert jnp.allclose(out, ref, atol=1e-4, rtol=1e-4), "mismatch vs reference"

    # Multi-tile path (batch not a multiple of the row tile).
    batch2 = 300
    x2 = jax.random.normal(kx2, (batch2, input_size), jnp.float32)
    out2 = jax.block_until_ready(cbf_forward(x2, params, tile_b=128))
    ref2 = reference_forward(x2, params)
    assert out2.shape == (batch2, 1)
    assert jnp.allclose(out2, ref2, atol=1e-4, rtol=1e-4), "mismatch (tiled)"

    print("KERNEL_OK")
</pallas_src>

<mosaic_0001>
module attributes {stable_mosaic.version = 11 : i64} {
  func.func @cbf_kernel(%arg0: i32, %arg1: memref<128x32xf32, #tpu.memory_space<vmem>>, %arg2: memref<32x128xf32, #tpu.memory_space<vmem>>, %arg3: memref<1x128xf32, #tpu.memory_space<vmem>>, %arg4: memref<128x128xf32, #tpu.memory_space<vmem>>, %arg5: memref<1x128xf32, #tpu.memory_space<vmem>>, %arg6: memref<8x128xf32, #tpu.memory_space<vmem>>, %arg7: memref<1x1xf32, #tpu.memory_space<vmem>>, %arg8: memref<1x1x128xf32, #tpu.memory_space<vmem>>) attributes {dimension_semantics = [#tpu.dimension_semantics<parallel>], iteration_bounds = array<i64: 1>, scalar_prefetch = 0 : i64, scratch_operands = 0 : i64, tpu.core_type = #tpu.core_type<tc>, window_params = [{transform_indices = @transform_0, window_bounds = array<i64: 128, 32>}, {pipeline_mode = #tpu.pipeline_mode<synchronous>, transform_indices = @transform_1, window_bounds = array<i64: 32, 128>}, {pipeline_mode = #tpu.pipeline_mode<synchronous>, transform_indices = @transform_2, window_bounds = array<i64: 1, 128>}, {pipeline_mode = #tpu.pipeline_mode<synchronous>, transform_indices = @transform_3, window_bounds = array<i64: 128, 128>}, {pipeline_mode = #tpu.pipeline_mode<synchronous>, transform_indices = @transform_4, window_bounds = array<i64: 1, 128>}, {pipeline_mode = #tpu.pipeline_mode<synchronous>, transform_indices = @transform_5, window_bounds = array<i64: 8, 128>}, {pipeline_mode = #tpu.pipeline_mode<synchronous>, transform_indices = @transform_6, window_bounds = array<i64: 1, 1>}, {transform_indices = @transform_7, window_bounds = array<i64: 1, 1, 128>}]} {
    %c0 = arith.constant 0 : index
    %c0_0 = arith.constant 0 : index
    %0 = vector.load %arg1[%c0, %c0_0] : memref<128x32xf32, #tpu.memory_space<vmem>>, vector<128x32xf32>
    %c0_1 = arith.constant 0 : index
    %c0_2 = arith.constant 0 : index
    %1 = vector.load %arg2[%c0_1, %c0_2] : memref<32x128xf32, #tpu.memory_space<vmem>>, vector<32x128xf32>
    %cst = arith.constant dense<0.000000e+00> : vector<128x128xf32>
    %2 = tpu.matmul %0, %1, %cst {dimension_numbers = #tpu.dot_dimension_numbers<[1], [0], [0], [1], [0, 0, 1, 1], [], []>} : vector<128x32xf32>, vector<32x128xf32>, vector<128x128xf32> -> vector<128x128xf32>
    %c0_3 = arith.constant 0 : index
    %c0_4 = arith.constant 0 : index
    %3 = vector.load %arg3[%c0_3, %c0_4] : memref<1x128xf32, #tpu.memory_space<vmem>>, vector<1x128xf32>
    %4 = vector.broadcast %3 : vector<1x128xf32> to vector<128x128xf32>
    %5 = arith.addf %2, %4 : vector<128x128xf32>
    %cst_5 = arith.constant 0.000000e+00 : f32
    %6 = vector.broadcast %cst_5 : f32 to vector<128x128xf32>
    %7 = arith.maximumf %5, %6 : vector<128x128xf32>
    %c0_6 = arith.constant 0 : index
    %c0_7 = arith.constant 0 : index
    %8 = vector.load %arg4[%c0_6, %c0_7] : memref<128x128xf32, #tpu.memory_space<vmem>>, vector<128x128xf32>
    %cst_8 = arith.constant dense<0.000000e+00> : vector<128x128xf32>
    %9 = tpu.matmul %7, %8, %cst_8 {dimension_numbers = #tpu.dot_dimension_numbers<[1], [0], [0], [1], [0, 0, 1, 1], [], []>} : vector<128x128xf32>, vector<128x128xf32>, vector<128x128xf32> -> vector<128x128xf32>
    %c0_9 = arith.constant 0 : index
    %c0_10 = arith.constant 0 : index
    %10 = vector.load %arg5[%c0_9, %c0_10] : memref<1x128xf32, #tpu.memory_space<vmem>>, vector<1x128xf32>
    %11 = vector.broadcast %10 : vector<1x128xf32> to vector<128x128xf32>
    %12 = arith.addf %9, %11 : vector<128x128xf32>
    %cst_11 = arith.constant 0.000000e+00 : f32
    %13 = vector.broadcast %cst_11 : f32 to vector<128x128xf32>
    %14 = arith.maximumf %12, %13 : vector<128x128xf32>
    %c0_12 = arith.constant 0 : index
    %c0_13 = arith.constant 0 : index
    %15 = vector.load %arg6[%c0_12, %c0_13] : memref<8x128xf32, #tpu.memory_space<vmem>>, vector<8x128xf32>
    %cst_14 = arith.constant dense<0.000000e+00> : vector<8x128xf32>
    %16 = tpu.matmul %15, %14, %cst_14 {dimension_numbers = #tpu.dot_dimension_numbers<[1], [1], [0], [0], [0, 0, 1, 0], [], []>} : vector<8x128xf32>, vector<128x128xf32>, vector<8x128xf32> -> vector<8x128xf32>
    %17 = vector.extract_strided_slice %16 {offsets = [0, 0], sizes = [1, 128], strides = [1, 1]} : vector<8x128xf32> to vector<1x128xf32>
    %c0_15 = arith.constant 0 : index
    %c0_16 = arith.constant 0 : index
    %18 = vector.load %arg7[%c0_15, %c0_16] : memref<1x1xf32, #tpu.memory_space<vmem>>, vector<1x1xf32>
    %19 = vector.broadcast %18 : vector<1x1xf32> to vector<1x128xf32>
    %20 = arith.addf %17, %19 : vector<1x128xf32>
    %21 = vector.shape_cast %20 : vector<1x128xf32> to vector<1x1x128xf32>
    %c0_17 = arith.constant 0 : index
    %c0_18 = arith.constant 0 : index
    %c0_19 = arith.constant 0 : index
    %22 = vector.load %arg8[%c0_17, %c0_18, %c0_19] : memref<1x1x128xf32, #tpu.memory_space<vmem>>, vector<1x1x128xf32>
    tpu.vector_store %arg8[%c0_17, %c0_18, %c0_19], %21 {strides = array<i32>} : memref<1x1x128xf32, #tpu.memory_space<vmem>>, vector<1x1x128xf32>,
    return
  }
  func.func @transform_0(%arg0: i32) -> (i32, i32) {
    %c0_i32 = arith.constant 0 : i32
    %c0_i32_0 = arith.constant 0 : i32
    return %arg0, %c0_i32 : i32, i32
  }
  func.func @transform_1(%arg0: i32) -> (i32, i32) {
    %c0_i32 = arith.constant 0 : i32
    %c0_i32_0 = arith.constant 0 : i32
    %c0_i32_1 = arith.constant 0 : i32
    return %c0_i32, %c0_i32_0 : i32, i32
  }
  func.func @transform_2(%arg0: i32) -> (i32, i32) {
    %c0_i32 = arith.constant 0 : i32
    %c0_i32_0 = arith.constant 0 : i32
    %c0_i32_1 = arith.constant 0 : i32
    return %c0_i32, %c0_i32_0 : i32, i32
  }
  func.func @transform_3(%arg0: i32) -> (i32, i32) {
    %c0_i32 = arith.constant 0 : i32
    %c0_i32_0 = arith.constant 0 : i32
    %c0_i32_1 = arith.constant 0 : i32
    return %c0_i32, %c0_i32_0 : i32, i32
  }
  func.func @transform_4(%arg0: i32) -> (i32, i32) {
    %c0_i32 = arith.constant 0 : i32
    %c0_i32_0 = arith.constant 0 : i32
    %c0_i32_1 = arith.constant 0 : i32
    return %c0_i32, %c0_i32_0 : i32, i32
  }
  func.func @transform_5(%arg0: i32) -> (i32, i32) {
    %c0_i32 = arith.constant 0 : i32
    %c0_i32_0 = arith.constant 0 : i32
    %c0_i32_1 = arith.constant 0 : i32
    return %c0_i32, %c0_i32_0 : i32, i32
  }
  func.func @transform_6(%arg0: i32) -> (i32, i32) {
    %c0_i32 = arith.constant 0 : i32
    %c0_i32_0 = arith.constant 0 : i32
    %c0_i32_1 = arith.constant 0 : i32
    return %c0_i32, %c0_i32_0 : i32, i32
  }
  func.func @transform_7(%arg0: i32) -> (i32, i32, i32) {
    %c0_i32 = arith.constant 0 : i32
    %c0_i32_0 = arith.constant 0 : i32
    %c0_i32_1 = arith.constant 0 : i32
    return %arg0, %c0_i32, %c0_i32_0 : i32, i32, i32
  }
}

</mosaic_0001>

<llo_original>
// kernel: tpu_custom_call.1
$region0: #{tpu_custom_call.1}
  #allocation0 [shape = 'u32[]', space=smem, size = 0x4, offset = 0x4, fixed_abs, tag = 'smem constant byte address 0x4 - core index']
  #allocation1 [shape = 'u32[144,128]{1,0:T(1,128)}', space=vmem, size = 0x12000, scoped, tag = 'internal scratch']
  #allocation2 [shape = 'f32[1,1]{1,0:T(1,128)S(1)}', space=vmem, size = 0x200, scoped, tag = 'scoped memory for tpu_custom_call.1']
  %s0 = inlined_call_operand.vmem [shape: f32[128,32], index: 0, kind: input, shape index: {}]
  %s1 = inlined_call_operand.vmem [shape: f32[32,128], index: 1, kind: input, shape index: {}]
  %s2 = inlined_call_operand.vmem [shape: f32[1,128], index: 2, kind: input, shape index: {}]
  %s3 = inlined_call_operand.vmem [shape: f32[128,128], index: 3, kind: input, shape index: {}]
  %s4 = inlined_call_operand.vmem [shape: f32[1,128], index: 4, kind: input, shape index: {}]
  %s5 = inlined_call_operand.vmem [shape: f32[8,128], index: 5, kind: input, shape index: {}]
  %s6 = inlined_call_operand.<no memory space> [shape: f32[1,1], index: 6, kind: input, shape index: {}]
  %s7 = inlined_call_operand.hbm [shape: f32[1,1,128], index: 7, kind: output, shape index: {}]
  %s8 = sld [smem:[#allocation0]]
  $region38: #{tpu_custom_call.1} parent=0
    _
  %s10 = ssub.s32 1, %s8
  %s11 = scalar_select 0, %s10, %s8
  %v12 = vstv %s6
  %13 = vst [vmem:[#allocation2] sm:$0x1] %v12
  $region1: #{tpu_custom_call.1} parent=0
    #allocation3 [shape = 'u8[512]{0}', space=vmem, size = 0x400, scoped, tag = 'output window, operand 0, single buffered']
    #allocation4 [shape = 's32[1]{0}', space=sflag, size = 0x4, scoped, tag = 'scoped memory for tpu_custom_call.1']
    %14 = vsyncpa [#allocation4], 0
    // Predicated region
    $region2: #{tpu_custom_call.1} parent=1 // pred_check
      _
    $region3: #{tpu_custom_call.1} parent=1 // pred_check_branch
      %16 = sbr.rel (0) target = $region5
    $region4: #{tpu_custom_call.1} parent=1 // pred_region
      _
    $region5: #{tpu_custom_call.1} parent=1 // pred_fallthru
      _
    // Predicated region
    $region6: #{tpu_custom_call.1} parent=1 // pred_check
      _
    $region7: #{tpu_custom_call.1} parent=1 // pred_check_branch
      %18 = sbr.rel (0) target = $region9
    $region8: #{tpu_custom_call.1} parent=1 // pred_region
      _
    $region9: #{tpu_custom_call.1} parent=1 // pred_fallthru
      _
    // Predicated region
    $region10: #{tpu_custom_call.1} parent=1 // pred_check
      _
    $region11: #{tpu_custom_call.1} parent=1 // pred_check_branch
      %20 = sbr.rel (0) target = $region13
    $region12: #{tpu_custom_call.1} parent=1 // pred_region
      _
    $region13: #{tpu_custom_call.1} parent=1 // pred_fallthru
      _
    // Predicated region
    $region14: #{tpu_custom_call.1} parent=1 // pred_check
      _
    $region15: #{tpu_custom_call.1} parent=1 // pred_check_branch
      %22 = sbr.rel (0) target = $region17
    $region16: #{tpu_custom_call.1} parent=1 // pred_region
      _
    $region17: #{tpu_custom_call.1} parent=1 // pred_fallthru
      _
    // Predicated region
    $region18: #{tpu_custom_call.1} parent=1 // pred_check
      _
    $region19: #{tpu_custom_call.1} parent=1 // pred_check_branch
      %24 = sbr.rel (0) target = $region21
    $region20: #{tpu_custom_call.1} parent=1 // pred_region
      _
    $region21: #{tpu_custom_call.1} parent=1 // pred_fallthru
      _
    // Predicated region
    $region22: #{tpu_custom_call.1} parent=1 // pred_check
      _
    $region23: #{tpu_custom_call.1} parent=1 // pred_check_branch
      %26 = sbr.rel (0) target = $region25
    $region24: #{tpu_custom_call.1} parent=1 // pred_region
      _
    $region25: #{tpu_custom_call.1} parent=1 // pred_fallthru
      _
    // Predicated region
    $region26: #{tpu_custom_call.1} parent=1 // pred_check
      _
    $region27: #{tpu_custom_call.1} parent=1 // pred_check_branch
      %28 = sbr.rel (0) target = $region29
    $region28: #{tpu_custom_call.1} parent=1 // pred_region
      _
    $region29: #{tpu_custom_call.1} parent=1 // pred_fallthru
      _
    %v29 = vld [vmem:[%s0] sm:$0xff]
    %v30 = vld [vmem:[%s0 + $0x8] sm:$0xff]
    %v31 = vld [vmem:[%s0 + $0x10] sm:$0xff]
    %v32 = vld [vmem:[%s0 + $0x18] sm:$0xff]
    %v33 = vld [vmem:[%s0 + $0x20] sm:$0xff]
    %v34 = vld [vmem:[%s0 + $0x28] sm:$0xff]
    %v35 = vld [vmem:[%s0 + $0x30] sm:$0xff]
    %v36 = vld [vmem:[%s0 + $0x38] sm:$0xff]
    %v37 = vld [vmem:[%s0 + $0x40] sm:$0xff]
    %v38 = vld [vmem:[%s0 + $0x48] sm:$0xff]
    %v39 = vld [vmem:[%s0 + $0x50] sm:$0xff]
    %v40 = vld [vmem:[%s0 + $0x58] sm:$0xff]
    %v41 = vld [vmem:[%s0 + $0x60] sm:$0xff]
    %v42 = vld [vmem:[%s0 + $0x68] sm:$0xff]
    %v43 = vld [vmem:[%s0 + $0x70] sm:$0xff]
    %v44 = vld [vmem:[%s0 + $0x78] sm:$0xff]
    %v45 = vld [vmem:[%s1] sm:$0xff]
    %v46 = vld [vmem:[%s1 + $0x8] sm:$0xff]
    %v47 = vld [vmem:[%s1 + $0x10] sm:$0xff]
    %v48 = vld [vmem:[%s1 + $0x18] sm:$0xff]
    %v49 = vld [vmem:[%s2] sm:$0x1]
    %v51 = vlaneseq
    %v52 = vshrl.u32 %v51, 7
    %v53 = vsub.s32 0, %v52
    %v54 = vrot.slane %v49, %v53
    %vm56 = vcmask 261120
    %v58 = vsel %vm56, %v29, 0
    %v61 = vsel %vm56, %v30, 0
    %v64 = vsel %vm56, %v31, 0
    %v67 = vsel %vm56, %v32, 0
    %v70 = vsel %vm56, %v33, 0
    %v73 = vsel %vm56, %v34, 0
    %v76 = vsel %vm56, %v35, 0
    %v79 = vsel %vm56, %v36, 0
    %v82 = vsel %vm56, %v37, 0
    %v85 = vsel %vm56, %v38, 0
    %v88 = vsel %vm56, %v39, 0
    %v91 = vsel %vm56, %v40, 0
    %v94 = vsel %vm56, %v41, 0
    %v97 = vsel %vm56, %v42, 0
    %v100 = vsel %vm56, %v43, 0
    %v103 = vsel %vm56, %v44, 0
    %105 = vmatprep.subr.mxu0 0.0
    %106 = vmatpush1.msra.mxu0 %v45
    %107 = vmatprep.subr.mxu0 0.0
    %108 = vmatpush1.msra.mxu0 %v46
    %109 = vmatprep.subr.mxu0 0.0
    %110 = vmatpush1.msra.mxu0 %v47
    %111 = vmatprep.subr.mxu0 0.0
    %112 = vmatpush1.msra.mxu0 %v48
    %113 = vmatprep.subr.mxu0 0.0
    %114 = vmatpush1.msra.mxu0 0.0
    %115 = vmatprep.subr.mxu0 0.0
    %116 = vmatpush1.msra.mxu0 0.0
    %117 = vmatprep.subr.mxu0 0.0
    %118 = vmatpush1.msra.mxu0 0.0
    %119 = vmatprep.subr.mxu0 0.0
    %120 = vmatpush1.msra.mxu0 0.0
    %121 = vmatprep.subr.mxu0 0.0
    %122 = vmatpush1.msra.mxu0 0.0
    %123 = vmatprep.subr.mxu0 0.0
    %124 = vmatpush1.msra.mxu0 0.0
    %125 = vmatprep.subr.mxu0 0.0
    %126 = vmatpush1.msra.mxu0 0.0
    %127 = vmatprep.subr.mxu0 0.0
    %128 = vmatpush1.msra.mxu0 0.0
    %129 = vmatprep.subr.mxu0 0.0
    %130 = vmatpush1.msra.mxu0 0.0
    %131 = vmatprep.subr.mxu0 0.0
    %132 = vmatpush1.msra.mxu0 0.0
    %133 = vmatprep.subr.mxu0 0.0
    %134 = vmatpush1.msra.mxu0 0.0
    %135 = vmatprep.subr.mxu0 0.0
    %136 = vmatpush1.msra.mxu0 0.0
    %137 = vmatprep.subr.mxu0 0.0
    %138 = vmatpush1.msra.mxu0 0.0
    %139 = vmatprep.subr.mxu0 0.0
    %140 = vmatpush1.msra.mxu0 0.0
    %141 = vmatprep.subr.mxu0 0.0
    %142 = vmatpush1.msra.mxu0 0.0
    %143 = vmatprep.subr.mxu0 0.0
    %144 = vmatpush1.msra.mxu0 0.0
    %145 = vmatprep.subr.mxu0 0.0
    %146 = vmatpush1.msra.mxu0 0.0
    %147 = vmatprep.subr.mxu0 0.0
    %148 = vmatpush1.msra.mxu0 0.0
    %149 = vmatprep.subr.mxu0 0.0
    %150 = vmatpush1.msra.mxu0 0.0
    %151 = vmatprep.subr.mxu0 0.0
    %152 = vmatpush1.msra.mxu0 0.0
    %153 = vmatprep.subr.mxu0 0.0
    %154 = vmatpush1.msra.mxu0 0.0
    %155 = vmatprep.subr.mxu0 0.0
    %156 = vmatpush1.msra.mxu0 0.0
    %157 = vmatprep.subr.mxu0 0.0
    %158 = vmatpush1.msra.mxu0 0.0
    %159 = vmatprep.subr.mxu0 0.0
    %160 = vmatpush1.msra.mxu0 0.0
    %161 = vmatprep.subr.mxu0 0.0
    %162 = vmatpush1.msra.mxu0 0.0
    %163 = vmatprep.subr.mxu0 0.0
    %164 = vmatpush1.msra.mxu0 0.0
    %165 = vmatprep.subr.mxu0 0.0
    %166 = vmatpush1.msra.mxu0 0.0
    %167 = vmatprep.subr.mxu0 0.0
    %168 = vmatpush1.msra.mxu0 0.0
    %169 = vmatprep.mubr.f32.mxu0 0.0
    %170 = vmatmul.mubr.f32.gmra.mrb[0].mxu0 %v58
    %v171 = vpop.f32.mrb[0].mxu0
    %v172 = vadd.f32 %v54, %v171
    %v173 = vpop.f32.mrb[0].mxu0
    %174 = vmatprep.mubr.f32.mxu0 0.0
    %175 = vmatmul.mubr.f32.gmra.mrb[0].mxu0 %v61
    %v176 = vpop.f32.mrb[0].mxu0
    %v177 = vadd.f32 %v54, %v176
    %v178 = vpop.f32.mrb[0].mxu0
    %179 = vmatprep.mubr.f32.mxu0 0.0
    %180 = vmatmul.mubr.f32.gmra.mrb[0].mxu0 %v64
    %v181 = vpop.f32.mrb[0].mxu0
    %v182 = vadd.f32 %v54, %v181
    %v183 = vpop.f32.mrb[0].mxu0
    %184 = vmatprep.mubr.f32.mxu0 0.0
    %185 = vmatmul.mubr.f32.gmra.mrb[0].mxu0 %v67
    %v186 = vpop.f32.mrb[0].mxu0
    %v187 = vadd.f32 %v54, %v186
    %v188 = vpop.f32.mrb[0].mxu0
    %189 = vmatprep.mubr.f32.mxu0 0.0
    %190 = vmatmul.mubr.f32.gmra.mrb[0].mxu0 %v70
    %v191 = vpop.f32.mrb[0].mxu0
    %v192 = vadd.f32 %v54, %v191
    %v193 = vpop.f32.mrb[0].mxu0
    %194 = vmatprep.mubr.f32.mxu0 0.0
    %195 = vmatmul.mubr.f32.gmra.mrb[0].mxu0 %v73
    %v196 = vpop.f32.mrb[0].mxu0
    %v197 = vadd.f32 %v54, %v196
    %v198 = vpop.f32.mrb[0].mxu0
    %199 = vmatprep.mubr.f32.mxu0 0.0
    %200 = vmatmul.mubr.f32.gmra.mrb[0].mxu0 %v76
    %v201 = vpop.f32.mrb[0].mxu0
    %v202 = vadd.f32 %v54, %v201
    %v203 = vpop.f32.mrb[0].mxu0
    %204 = vmatprep.mubr.f32.mxu0 0.0
    %205 = vmatmul.mubr.f32.gmra.mrb[0].mxu0 %v79
    %v206 = vpop.f32.mrb[0].mxu0
    %v207 = vadd.f32 %v54, %v206
    %v208 = vpop.f32.mrb[0].mxu0
    %209 = vmatprep.mubr.f32.mxu0 0.0
    %210 = vmatmul.mubr.f32.gmra.mrb[0].mxu0 %v82
    %v211 = vpop.f32.mrb[0].mxu0
    %v212 = vadd.f32 %v54, %v211
    %v213 = vpop.f32.mrb[0].mxu0
    %214 = vmatprep.mubr.f32.mxu0 0.0
    %215 = vmatmul.mubr.f32.gmra.mrb[0].mxu0 %v85
    %v216 = vpop.f32.mrb[0].mxu0
    %v217 = vadd.f32 %v54, %v216
    %v218 = vpop.f32.mrb[0].mxu0
    %219 = vmatprep.mubr.f32.mxu0 0.0
    %220 = vmatmul.mubr.f32.gmra.mrb[0].mxu0 %v88
    %v221 = vpop.f32.mrb[0].mxu0
    %v222 = vadd.f32 %v54, %v221
    %v223 = vpop.f32.mrb[0].mxu0
    %224 = vmatprep.mubr.f32.mxu0 0.0
    %225 = vmatmul.mubr.f32.gmra.mrb[0].mxu0 %v91
    %v226 = vpop.f32.mrb[0].mxu0
    %v227 = vadd.f32 %v54, %v226
    %v228 = vpop.f32.mrb[0].mxu0
    %229 = vmatprep.mubr.f32.mxu0 0.0
    %230 = vmatmul.mubr.f32.gmra.mrb[0].mxu0 %v94
    %v231 = vpop.f32.mrb[0].mxu0
    %v232 = vadd.f32 %v54, %v231
    %v233 = vpop.f32.mrb[0].mxu0
    %234 = vmatprep.mubr.f32.mxu0 0.0
    %235 = vmatmul.mubr.f32.gmra.mrb[0].mxu0 %v97
    %v236 = vpop.f32.mrb[0].mxu0
    %v237 = vadd.f32 %v54, %v236
    %v238 = vpop.f32.mrb[0].mxu0
    %239 = vmatprep.mubr.f32.mxu0 0.0
    %240 = vmatmul.mubr.f32.gmra.mrb[0].mxu0 %v100
    %v241 = vpop.f32.mrb[0].mxu0
    %v242 = vadd.f32 %v54, %v241
    %v243 = vpop.f32.mrb[0].mxu0
    %244 = vmatprep.mubr.f32.mxu0 0.0
    %245 = vmatmul.mubr.f32.gmra.mrb[0].mxu0 %v103
    %v246 = vpop.f32.mrb[0].mxu0
    %v247 = vadd.f32 %v54, %v246
    %v248 = vpop.f32.mrb[0].mxu0
    %249 = vdwg.mxu0
    %v250 = vmax.f32 %v172, 0.0
    %v251 = vmax.f32 %v177, 0.0
    %v252 = vmax.f32 %v182, 0.0
    %v253 = vmax.f32 %v187, 0.0
    %v254 = vmax.f32 %v192, 0.0
    %v255 = vmax.f32 %v197, 0.0
    %v256 = vmax.f32 %v202, 0.0
    %v257 = vmax.f32 %v207, 0.0
    %v258 = vmax.f32 %v212, 0.0
    %v259 = vmax.f32 %v217, 0.0
    %v260 = vmax.f32 %v222, 0.0
    %v261 = vmax.f32 %v227, 0.0
    %v262 = vmax.f32 %v232, 0.0
    %v263 = vmax.f32 %v237, 0.0
    %v264 = vmax.f32 %v242, 0.0
    %v265 = vmax.f32 %v247, 0.0
    %v266 = vld [vmem:[%s3] sm:$0xff]
    %v267 = vld [vmem:[%s3 + $0x8] sm:$0xff]
    %v268 = vld [vmem:[%s3 + $0x10] sm:$0xff]
    %v269 = vld [vmem:[%s3 + $0x18] sm:$0xff]
    %v270 = vld [vmem:[%s3 + $0x20] sm:$0xff]
    %v271 = vld [vmem:[%s3 + $0x28] sm:$0xff]
    %v272 = vld [vmem:[%s3 + $0x30] sm:$0xff]
    %v273 = vld [vmem:[%s3 + $0x38] sm:$0xff]
    %v274 = vld [vmem:[%s3 + $0x40] sm:$0xff]
    %v275 = vld [vmem:[%s3 + $0x48] sm:$0xff]
    %v276 = vld [vmem:[%s3 + $0x50] sm:$0xff]
    %v277 = vld [vmem:[%s3 + $0x58] sm:$0xff]
    %v278 = vld [vmem:[%s3 + $0x60] sm:$0xff]
    %v279 = vld [vmem:[%s3 + $0x68] sm:$0xff]
    %v280 = vld [vmem:[%s3 + $0x70] sm:$0xff]
    %v281 = vld [vmem:[%s3 + $0x78] sm:$0xff]
    %v282 = vld [vmem:[%s4] sm:$0x1]
    %v284 = vlaneseq
    %v285 = vshrl.u32 %v284, 7
    %v286 = vsub.s32 0, %v285
    %v287 = vrot.slane %v282, %v286
    %289 = vmatprep.subr.mxu0 0.0
    %290 = vmatpush1.msra.mxu0 %v266
    %291 = vmatprep.subr.mxu0 0.0
    %292 = vmatpush1.msra.mxu0 %v267
    %293 = vmatprep.subr.mxu0 0.0
    %294 = vmatpush1.msra.mxu0 %v268
    %295 = vmatprep.subr.mxu0 0.0
    %296 = vmatpush1.msra.mxu0 %v269
    %297 = vmatprep.subr.mxu0 0.0
    %298 = vmatpush1.msra.mxu0 %v270
    %299 = vmatprep.subr.mxu0 0.0
    %300 = vmatpush1.msra.mxu0 %v271
    %301 = vmatprep.subr.mxu0 0.0
    %302 = vmatpush1.msra.mxu0 %v272
    %303 = vmatprep.subr.mxu0 0.0
    %304 = vmatpush1.msra.mxu0 %v273
    %305 = vmatprep.subr.mxu0 0.0
    %306 = vmatpush1.msra.mxu0 %v274
    %307 = vmatprep.subr.mxu0 0.0
    %308 = vmatpush1.msra.mxu0 %v275
    %309 = vmatprep.subr.mxu0 0.0
    %310 = vmatpush1.msra.mxu0 %v276
    %311 = vmatprep.subr.mxu0 0.0
    %312 = vmatpush1.msra.mxu0 %v277
    %313 = vmatprep.subr.mxu0 0.0
    %314 = vmatpush1.msra.mxu0 %v278
    %315 = vmatprep.subr.mxu0 0.0
    %316 = vmatpush1.msra.mxu0 %v279
    %317 = vmatprep.subr.mxu0 0.0
    %318 = vmatpush1.msra.mxu0 %v280
    %319 = vmatprep.subr.mxu0 0.0
    %320 = vmatpush1.msra.mxu0 %v281
    %321 = vmatprep.subr.mxu0 0.0
    %322 = vmatpush1.msra.mxu0 0.0
    %323 = vmatprep.subr.mxu0 0.0
    %324 = vmatpush1.msra.mxu0 0.0
    %325 = vmatprep.subr.mxu0 0.0
    %326 = vmatpush1.msra.mxu0 0.0
    %327 = vmatprep.subr.mxu0 0.0
    %328 = vmatpush1.msra.mxu0 0.0
    %329 = vmatprep.subr.mxu0 0.0
    %330 = vmatpush1.msra.mxu0 0.0
    %331 = vmatprep.subr.mxu0 0.0
    %332 = vmatpush1.msra.mxu0 0.0
    %333 = vmatprep.subr.mxu0 0.0
    %334 = vmatpush1.msra.mxu0 0.0
    %335 = vmatprep.subr.mxu0 0.0
    %336 = vmatpush1.msra.mxu0 0.0
    %337 = vmatprep.subr.mxu0 0.0
    %338 = vmatpush1.msra.mxu0 0.0
    %339 = vmatprep.subr.mxu0 0.0
    %340 = vmatpush1.msra.mxu0 0.0
    %341 = vmatprep.subr.mxu0 0.0
    %342 = vmatpush1.msra.mxu0 0.0
    %343 = vmatprep.subr.mxu0 0.0
    %344 = vmatpush1.msra.mxu0 0.0
    %345 = vmatprep.subr.mxu0 0.0
    %346 = vmatpush1.msra.mxu0 0.0
    %347 = vmatprep.subr.mxu0 0.0
    %348 = vmatpush1.msra.mxu0 0.0
    %349 = vmatprep.subr.mxu0 0.0
    %350 = vmatpush1.msra.mxu0 0.0
    %351 = vmatprep.subr.mxu0 0.0
    %352 = vmatpush1.msra.mxu0 0.0
    %353 = vmatprep.mubr.f32.mxu0 0.0
    %354 = vmatmul.mubr.f32.gmra.mrb[0].mxu0 %v250
    %v355 = vpop.f32.mrb[0].mxu0
    %v356 = vadd.f32 %v287, %v355
    %v357 = vpop.f32.mrb[0].mxu0
    %358 = vmatprep.mubr.f32.mxu0 0.0
    %359 = vmatmul.mubr.f32.gmra.mrb[0].mxu0 %v251
    %v360 = vpop.f32.mrb[0].mxu0
    %v361 = vadd.f32 %v287, %v360
    %v362 = vpop.f32.mrb[0].mxu0
    %363 = vmatprep.mubr.f32.mxu0 0.0
    %364 = vmatmul.mubr.f32.gmra.mrb[0].mxu0 %v252
    %v365 = vpop.f32.mrb[0].mxu0
    %v366 = vadd.f32 %v287, %v365
    %v367 = vpop.f32.mrb[0].mxu0
    %368 = vmatprep.mubr.f32.mxu0 0.0
    %369 = vmatmul.mubr.f32.gmra.mrb[0].mxu0 %v253
    %v370 = vpop.f32.mrb[0].mxu0
    %v371 = vadd.f32 %v287, %v370
    %v372 = vpop.f32.mrb[0].mxu0
    %373 = vmatprep.mubr.f32.mxu0 0.0
    %374 = vmatmul.mubr.f32.gmra.mrb[0].mxu0 %v254
    %v375 = vpop.f32.mrb[0].mxu0
    %v376 = vadd.f32 %v287, %v375
    %v377 = vpop.f32.mrb[0].mxu0
    %378 = vmatprep.mubr.f32.mxu0 0.0
    %379 = vmatmul.mubr.f32.gmra.mrb[0].mxu0 %v255
    %v380 = vpop.f32.mrb[0].mxu0
    %v381 = vadd.f32 %v287, %v380
    %v382 = vpop.f32.mrb[0].mxu0
    %383 = vmatprep.mubr.f32.mxu0 0.0
    %384 = vmatmul.mubr.f32.gmra.mrb[0].mxu0 %v256
    %v385 = vpop.f32.mrb[0].mxu0
    %v386 = vadd.f32 %v287, %v385
    %v387 = vpop.f32.mrb[0].mxu0
    %388 = vmatprep.mubr.f32.mxu0 0.0
    %389 = vmatmul.mubr.f32.gmra.mrb[0].mxu0 %v257
    %v390 = vpop.f32.mrb[0].mxu0
    %v391 = vadd.f32 %v287, %v390
    %v392 = vpop.f32.mrb[0].mxu0
    %393 = vmatprep.mubr.f32.mxu0 0.0
    %394 = vmatmul.mubr.f32.gmra.mrb[0].mxu0 %v258
    %v395 = vpop.f32.mrb[0].mxu0
    %v396 = vadd.f32 %v287, %v395
    %v397 = vpop.f32.mrb[0].mxu0
    %398 = vmatprep.mubr.f32.mxu0 0.0
    %399 = vmatmul.mubr.f32.gmra.mrb[0].mxu0 %v259
    %v400 = vpop.f32.mrb[0].mxu0
    %v401 = vadd.f32 %v287, %v400
    %v402 = vpop.f32.mrb[0].mxu0
    %403 = vmatprep.mubr.f32.mxu0 0.0
    %404 = vmatmul.mubr.f32.gmra.mrb[0].mxu0 %v260
    %v405 = vpop.f32.mrb[0].mxu0
    %v406 = vadd.f32 %v287, %v405
    %v407 = vpop.f32.mrb[0].mxu0
    %408 = vmatprep.mubr.f32.mxu0 0.0
    %409 = vmatmul.mubr.f32.gmra.mrb[0].mxu0 %v261
    %v410 = vpop.f32.mrb[0].mxu0
    %v411 = vadd.f32 %v287, %v410
    %v412 = vpop.f32.mrb[0].mxu0
    %413 = vmatprep.mubr.f32.mxu0 0.0
    %414 = vmatmul.mubr.f32.gmra.mrb[0].mxu0 %v262
    %v415 = vpop.f32.mrb[0].mxu0
    %v416 = vadd.f32 %v287, %v415
    %v417 = vpop.f32.mrb[0].mxu0
    %418 = vmatprep.mubr.f32.mxu0 0.0
    %419 = vmatmul.mubr.f32.gmra.mrb[0].mxu0 %v263
    %v420 = vpop.f32.mrb[0].mxu0
    %v421 = vadd.f32 %v287, %v420
    %v422 = vpop.f32.mrb[0].mxu0
    %423 = vmatprep.mubr.f32.mxu0 0.0
    %424 = vmatmul.mubr.f32.gmra.mrb[0].mxu0 %v264
    %v425 = vpop.f32.mrb[0].mxu0
    %v426 = vadd.f32 %v287, %v425
    %v427 = vpop.f32.mrb[0].mxu0
    %428 = vmatprep.mubr.f32.mxu0 0.0
    %429 = vmatmul.mubr.f32.gmra.mrb[0].mxu0 %v265
    %v430 = vpop.f32.mrb[0].mxu0
    %v431 = vadd.f32 %v287, %v430
    %v432 = vpop.f32.mrb[0].mxu0
    %433 = vdwg.mxu0
    %v434 = vmax.f32 %v356, 0.0
    %v435 = vmax.f32 %v361, 0.0
    %v436 = vmax.f32 %v366, 0.0
    %v437 = vmax.f32 %v371, 0.0
    %v438 = vmax.f32 %v376, 0.0
    %v439 = vmax.f32 %v381, 0.0
    %v440 = vmax.f32 %v386, 0.0
    %v441 = vmax.f32 %v391, 0.0
    %v442 = vmax.f32 %v396, 0.0
    %v443 = vmax.f32 %v401, 0.0
    %v444 = vmax.f32 %v406, 0.0
    %v445 = vmax.f32 %v411, 0.0
    %v446 = vmax.f32 %v416, 0.0
    %v447 = vmax.f32 %v421, 0.0
    %v448 = vmax.f32 %v426, 0.0
    %v449 = vmax.f32 %v431, 0.0
    %v450 = vld [vmem:[%s5] sm:$0xff]
    %451 = vmatprep.subr.mxu0 0.0
    %452 = vmatpush1.xpose.msra.mxu0 %v434
    %453 = vmatprep.subr.mxu0 0.0
    %454 = vmatpush1.xpose.msra.mxu0 %v435
    %455 = vmatprep.subr.mxu0 0.0
    %456 = vmatpush1.xpose.msra.mxu0 %v436
    %457 = vmatprep.subr.mxu0 0.0
    %458 = vmatpush1.xpose.msra.mxu0 %v437
    %459 = vmatprep.subr.mxu0 0.0
    %460 = vmatpush1.xpose.msra.mxu0 %v438
    %461 = vmatprep.subr.mxu0 0.0
    %462 = vmatpush1.xpose.msra.mxu0 %v439
    %463 = vmatprep.subr.mxu0 0.0
    %464 = vmatpush1.xpose.msra.mxu0 %v440
    %465 = vmatprep.subr.mxu0 0.0
    %466 = vmatpush1.xpose.msra.mxu0 %v441
    %467 = vmatprep.subr.mxu0 0.0
    %468 = vmatpush1.xpose.msra.mxu0 %v442
    %469 = vmatprep.subr.mxu0 0.0
    %470 = vmatpush1.xpose.msra.mxu0 %v443
    %471 = vmatprep.subr.mxu0 0.0
    %472 = vmatpush1.xpose.msra.mxu0 %v444
    %473 = vmatprep.subr.mxu0 0.0
    %474 = vmatpush1.xpose.msra.mxu0 %v445
    %475 = vmatprep.subr.mxu0 0.0
    %476 = vmatpush1.xpose.msra.mxu0 %v446
    %477 = vmatprep.subr.mxu0 0.0
    %478 = vmatpush1.xpose.msra.mxu0 %v447
    %479 = vmatprep.subr.mxu0 0.0
    %480 = vmatpush1.xpose.msra.mxu0 %v448
    %481 = vmatprep.subr.mxu0 0.0
    %482 = vmatpush1.xpose.msra.mxu0 %v449
    %483 = vmatprep.subr.mxu0 0.0
    %484 = vmatpush1.xpose.msra.mxu0 0.0
    %485 = vmatprep.subr.mxu0 0.0
    %486 = vmatpush1.xpose.msra.mxu0 0.0
    %487 = vmatprep.subr.mxu0 0.0
    %488 = vmatpush1.xpose.msra.mxu0 0.0
    %489 = vmatprep.subr.mxu0 0.0
    %490 = vmatpush1.xpose.msra.mxu0 0.0
    %491 = vmatprep.subr.mxu0 0.0
    %492 = vmatpush1.xpose.msra.mxu0 0.0
    %493 = vmatprep.subr.mxu0 0.0
    %494 = vmatpush1.xpose.msra.mxu0 0.0
    %495 = vmatprep.subr.mxu0 0.0
    %496 = vmatpush1.xpose.msra.mxu0 0.0
    %497 = vmatprep.subr.mxu0 0.0
    %498 = vmatpush1.xpose.msra.mxu0 0.0
    %499 = vmatprep.subr.mxu0 0.0
    %500 = vmatpush1.xpose.msra.mxu0 0.0
    %501 = vmatprep.subr.mxu0 0.0
    %502 = vmatpush1.xpose.msra.mxu0 0.0
    %503 = vmatprep.subr.mxu0 0.0
    %504 = vmatpush1.xpose.msra.mxu0 0.0
    %505 = vmatprep.subr.mxu0 0.0
    %506 = vmatpush1.xpose.msra.mxu0 0.0
    %507 = vmatprep.subr.mxu0 0.0
    %508 = vmatpush1.xpose.msra.mxu0 0.0
    %509 = vmatprep.subr.mxu0 0.0
    %510 = vmatpush1.xpose.msra.mxu0 0.0
    %511 = vmatprep.subr.mxu0 0.0
    %512 = vmatpush1.xpose.msra.mxu0 0.0
    %513 = vmatprep.subr.mxu0 0.0
    %514 = vmatpush1.xpose.msra.mxu0 0.0
    %515 = vmatprep.mubr.f32.mxu0 0.0
    %516 = vmatmul.mubr.f32.gmra.mrb[0].mxu0 %v450
    %v517 = vpop.f32.mrb[0].mxu0
    %v518 = vadd.f32 0.0, %v517
    %v519 = vpop.f32.mrb[0].mxu0
    %520 = vdwg.mxu0
    %v521 = vld [vmem:[#allocation2] sm:$0x1]
    %523 = vset.pattern.permute.xlu0 0
    %524 = vperm.xlu0 %523, %v521
    %v525 = vpop.permute.xlu0 %524
    %v527 = vlaneseq
    %v528 = vshrl.u32 %v527, 7
    %v529 = vsub.s32 0, %v528
    %v530 = vrot.slane %v525, %v529
    %v531 = vadd.f32 %v518, %v530
    %532 = vst [vmem:[#allocation3] sm:$0x1] %v531
    // Predicated region
    $region30: #{tpu_custom_call.1} parent=1 // pred_check
      _
    $region31: #{tpu_custom_call.1} parent=1 // pred_check_branch
      %534 = sbr.rel (0) target = $region33
    $region32: #{tpu_custom_call.1} parent=1 // pred_region
      %s536 = ssub.s32 16, 16
      %537 = vsyncadd [#allocation4], %s536
      %s539 = sshll.u32 [#allocation3], 4
      %s540 = int_to_ptr.vmem [resolvable:$true] %s539
      %542 = dma.vmem_to_hbm [thread:$0]  %s540, 16, %s7, [#allocation4]
    $region33: #{tpu_custom_call.1} parent=1 // pred_fallthru
      _
    // Predicated region
    $region34: #{tpu_custom_call.1} parent=1 // pred_check
      _
    $region35: #{tpu_custom_call.1} parent=1 // pred_check_branch
      %544 = sbr.rel (0) target = $region37
    $region36: #{tpu_custom_call.1} parent=1 // pred_region
      %545 = dma.done [#allocation4], 16
    $region37: #{tpu_custom_call.1} parent=1 // pred_fallthru
      _
    %546 = vsyncpa [#allocation4], 1

</llo_original>
